<compile_context>
chip_gen: v7x
topology: tpu7x:2x2x1
jax: 0.10.0
libtpu: 0.0.40
codegen_flags: <defaults>
</compile_context>

<pallas_src>
import jax
import jax.numpy as jnp
from jax.experimental import pallas as pl
from jax.experimental.pallas import tpu as pltpu


def _round_up(a, b):
    return (a + b - 1) // b * b


def lstm_kernel(h_ref, x_ref, xh_ref, c_ref,
                wgh_ref, wgx_ref, bg_ref, wpxh_ref, wph_ref, bp_ref,
                out_ref, ht_ref, ct_ref):
    """One row-tile of the LSTM cell + out-projection.

    h_ref/x_ref/xh_ref : (T,H)/(T,I)/(T,H) activation rows (input dtype; cast in-kernel)
    c_ref              : (T,H) previous cell state
    wgh_ref/wgx_ref    : (H,4*Hg)/(I,4*Hg) gate weights; gate g's columns live at the
                         128-aligned offset g*Hg (zero-padded lanes elsewhere)
    bg_ref             : (1,4*Hg) fused gate biases (f32)
    wpxh_ref/wph_ref   : (H,O) out-projection weights for x_hidden / h_t
    bp_ref             : (1,O) out-projection bias (f32)
    out_ref/ht_ref/ct_ref : (T,O)/(T,H)/(T,H) outputs
    """
    cdt = wgh_ref.dtype                 # matmul compute dtype (bf16 or f32)
    H = c_ref.shape[1]
    Hg = wgh_ref.shape[1] // 4          # 128-aligned per-gate column stride

    # In-kernel cast (avoids an extra wrapper-side HBM pass over the activations).
    h = h_ref[...].astype(cdt)
    x = x_ref[...].astype(cdt)
    c = c_ref[...].astype(jnp.float32)

    def gate_group(g0):
        """Pre-activations for two adjacent gates: columns [g0*Hg, (g0+2)*Hg)."""
        lo, hi = g0 * Hg, (g0 + 2) * Hg
        acc = jnp.dot(h, wgh_ref[:, lo:hi], preferred_element_type=jnp.float32)
        acc = acc + jnp.dot(x, wgx_ref[:, lo:hi], preferred_element_type=jnp.float32)
        return acc + bg_ref[:, lo:hi]

    def sigmoid(z):
        # One EUP tanh + 2 VPU ops instead of jax.nn.sigmoid's two exp branches + selects.
        return 0.5 * (jnp.tanh(0.5 * z) + 1.0)

    # Group [f | i] -> consumed immediately into c_t (small live f32 temps).
    fi = gate_group(0)
    f_t = sigmoid(fi[:, :H])
    i_t = sigmoid(fi[:, Hg:Hg + H])

    # Group [o | c_hat].
    oc = gate_group(2)
    c_hat = jnp.tanh(oc[:, Hg:Hg + H])
    c_t = f_t * c + i_t * c_hat
    o_t = sigmoid(oc[:, :H])
    h_t = o_t * jnp.maximum(c_t, 0.0)            # self.gate = ReLU

    # output = relu(x_hidden @ Wp_xh + h_t @ Wp_h + bp)
    proj = jnp.dot(xh_ref[...].astype(cdt), wpxh_ref[...],
                   preferred_element_type=jnp.float32)
    proj = proj + jnp.dot(h_t.astype(cdt), wph_ref[...],
                          preferred_element_type=jnp.float32)
    out = jnp.maximum(proj + bp_ref[...], 0.0)

    out_ref[...] = out.astype(out_ref.dtype)
    ht_ref[...] = h_t.astype(ht_ref.dtype)
    ct_ref[...] = c_t.astype(ct_ref.dtype)


def lstm_layer_pallas(x, x_hidden, c, h, params, *, row_tile=512, use_bf16=True):
    """x: (B,S,I), x_hidden/c/h: (B,S,H) -> (output (B,S,O), h_t (B,S,H), c_t (B,S,H))."""
    B, S, I = x.shape
    H = h.shape[-1]
    O = params["bp"].shape[-1]
    M = B * S

    cdt = jnp.bfloat16 if use_bf16 else jnp.float32
    out_dt = x.dtype            # output / h_t follow the input dtype
    ct_dt = jnp.float32         # cell state kept in f32 (recurrent precision)

    # ---- fuse & lane-align parameters (small one-time ops; activations untouched) ----
    Hg = _round_up(H, 128)
    wgh = jnp.zeros((H, 4 * Hg), jnp.float32)
    wgx = jnp.zeros((I, 4 * Hg), jnp.float32)
    bg = jnp.zeros((1, 4 * Hg), jnp.float32)
    for g, n in enumerate(("f", "i", "o", "c")):
        wgh = wgh.at[:, g * Hg:g * Hg + H].set(params[f"W{n}"])
        wgx = wgx.at[:, g * Hg:g * Hg + H].set(params[f"U{n}"])
        bg = bg.at[:, g * Hg:g * Hg + H].set(params[f"b{n}"])
    wgh = wgh.astype(cdt)
    wgx = wgx.astype(cdt)
    wpxh = params["Wp_xh"].astype(cdt)
    wph = params["Wp_h"].astype(cdt)
    bp = params["bp"].astype(jnp.float32)

    # ---- activations: no concat / cast / copy, just collapse (B,S) -> M rows ----
    h2 = h.reshape(M, H)
    x2 = x.reshape(M, I)
    xh2 = x_hidden.reshape(M, H)
    c2 = c.reshape(M, H)

    # ---- row tiling ----
    sub = 16                                            # bf16-friendly sublane multiple
    row_tile = max(sub, _round_up(min(row_tile, _round_up(M, sub)), sub))
    if M > 4 * sub:                                     # keep >=2 grid steps (v7x: 2 TCs)
        row_tile = min(row_tile, _round_up(-(-M // 2), sub))

    wbytes = 2 * ((wgh.size + wgx.size + wpxh.size + wph.size) * jnp.dtype(cdt).itemsize
                  + (bg.size + bp.size) * 4)            # weights (double-buffer worst case)

    def vmem_est(rt):
        per_row = ((2 * H + I) * x.dtype.itemsize + H * c.dtype.itemsize
                   + (O + H) * jnp.dtype(out_dt).itemsize
                   + H * jnp.dtype(ct_dt).itemsize)
        return 2 * rt * per_row + wbytes                # 2x = double-buffered row blocks

    VMEM_BUDGET = 40 << 20                              # fits v7x's 64 MiB with headroom
    while row_tile > sub and vmem_est(row_tile) > VMEM_BUDGET:
        row_tile = max(sub, _round_up(row_tile // 2, sub))
    vmem_limit = int(min(max(2 * vmem_est(row_tile) + (4 << 20), 32 << 20), 64 << 20))

    M_pad = _round_up(M, row_tile)
    if M_pad != M:                                      # ragged tail only; test hits no-pad path
        pad = ((0, M_pad - M), (0, 0))
        h2, x2, xh2, c2 = [jnp.pad(a, pad) for a in (h2, x2, xh2, c2)]

    grid = (M_pad // row_tile,)

    flops = 2 * M_pad * (H + I) * (4 * Hg) + 2 * M_pad * (2 * H) * O
    bytes_accessed = int(
        (h2.size + x2.size + xh2.size) * x.dtype.itemsize
        + c2.size * c.dtype.itemsize
        + wbytes // 2
        + M_pad * (O + H) * jnp.dtype(out_dt).itemsize
        + M_pad * H * jnp.dtype(ct_dt).itemsize
    )
    cost = pl.CostEstimate(flops=int(flops),
                           transcendentals=int(4 * M_pad * H),
                           bytes_accessed=bytes_accessed)

    out, h_t, c_t = pl.pallas_call(
        lstm_kernel,
        out_shape=(
            jax.ShapeDtypeStruct((M_pad, O), out_dt),
            jax.ShapeDtypeStruct((M_pad, H), out_dt),
            jax.ShapeDtypeStruct((M_pad, H), ct_dt),
        ),
        grid=grid,
        in_specs=[
            pl.BlockSpec((row_tile, H), lambda i: (i, 0)),      # h
            pl.BlockSpec((row_tile, I), lambda i: (i, 0)),      # x
            pl.BlockSpec((row_tile, H), lambda i: (i, 0)),      # x_hidden
            pl.BlockSpec((row_tile, H), lambda i: (i, 0)),      # c (previous cell state)
            pl.BlockSpec((H, 4 * Hg), lambda i: (0, 0)),        # gate weights from h
            pl.BlockSpec((I, 4 * Hg), lambda i: (0, 0)),        # gate weights from x
            pl.BlockSpec((1, 4 * Hg), lambda i: (0, 0)),        # gate biases
            pl.BlockSpec((H, O), lambda i: (0, 0)),             # out-proj (x_hidden rows)
            pl.BlockSpec((H, O), lambda i: (0, 0)),             # out-proj (h_t rows)
            pl.BlockSpec((1, O), lambda i: (0, 0)),             # out-proj bias
        ],
        out_specs=(
            pl.BlockSpec((row_tile, O), lambda i: (i, 0)),
            pl.BlockSpec((row_tile, H), lambda i: (i, 0)),
            pl.BlockSpec((row_tile, H), lambda i: (i, 0)),
        ),
        compiler_params=pltpu.CompilerParams(
            dimension_semantics=("parallel",),
            vmem_limit_bytes=vmem_limit,
        ),
        cost_estimate=cost,
    )(h2, x2, xh2, c2, wgh, wgx, bg, wpxh, wph, bp)

    out = out[:M].reshape(B, S, O)
    h_t = h_t[:M].reshape(B, S, H)
    c_t = c_t[:M].reshape(B, S, H)
    return out, h_t, c_t


def init_params(key, input_dim, hidden_dim, output_dim, dtype=jnp.float32):
    """Deterministic synthetic parameters.  Weights are stored (in, out), i.e. already
    transposed relative to torch nn.Linear.  The W_* and U_* biases of each gate are
    folded into a single bias per gate (mathematically identical)."""
    ks = jax.random.split(key, 20)

    def dense(k, fan_in, fan_out):
        return jax.random.normal(k, (fan_in, fan_out), dtype) * 0.1

    def bias(k, n):
        return jax.random.normal(k, (1, n), dtype) * 0.1

    p = {}
    names = ["f", "i", "o", "c"]
    for j, n in enumerate(names):
        p[f"W{n}"] = dense(ks[j], hidden_dim, hidden_dim)
        p[f"U{n}"] = dense(ks[4 + j], input_dim, hidden_dim)
        p[f"b{n}"] = bias(ks[8 + j], hidden_dim) + bias(ks[12 + j], hidden_dim)
    wp = dense(ks[16], 2 * hidden_dim, output_dim)
    p["Wp_xh"] = wp[:hidden_dim]
    p["Wp_h"] = wp[hidden_dim:]
    p["bp"] = bias(ks[17], output_dim)
    return p


def lstm_layer_ref(x, x_hidden, c, h, p):
    """Pure-JAX reference mirroring the PyTorch forward."""
    def gate(w, u, b):
        return h @ w + x @ u + b

    f_t = jax.nn.sigmoid(gate(p["Wf"], p["Uf"], p["bf"]))
    i_t = jax.nn.sigmoid(gate(p["Wi"], p["Ui"], p["bi"]))
    o_t = jax.nn.sigmoid(gate(p["Wo"], p["Uo"], p["bo"]))
    c_hat = jnp.tanh(gate(p["Wc"], p["Uc"], p["bc"]))
    c_t = f_t * c + i_t * c_hat
    h_t = o_t * jax.nn.relu(c_t)
    total = jnp.concatenate([x_hidden, h_t], axis=2)
    out = jax.nn.relu(
        total @ jnp.concatenate([p["Wp_xh"], p["Wp_h"]], axis=0) + p["bp"]
    )
    return out, h_t, c_t


if __name__ == "__main__":
    B, S = 2, 8
    input_dim, hidden_dim, output_dim = 16, 32, 8

    key = jax.random.PRNGKey(0)
    kx, kxh, kc, kh, kp = jax.random.split(key, 5)

    x = jax.random.normal(kx, (B, S, input_dim), jnp.float32)
    x_hidden = jax.random.normal(kxh, (B, S, hidden_dim), jnp.float32)
    c = jax.random.normal(kc, (B, S, hidden_dim), jnp.float32)
    h = jax.random.normal(kh, (B, S, hidden_dim), jnp.float32)
    params = init_params(kp, input_dim, hidden_dim, output_dim)

    out_r, h_r, c_r = lstm_layer_ref(x, x_hidden, c, h, params)

    # Fast path: bf16 MXU inputs (cast in-kernel), f32 accumulation / elementwise math.
    out, h_t, c_t = jax.block_until_ready(
        lstm_layer_pallas(x, x_hidden, c, h, params, use_bf16=True)
    )
    assert jnp.allclose(out, out_r, atol=3e-2, rtol=3e-2)
    assert jnp.allclose(h_t, h_r, atol=3e-2, rtol=3e-2)
    assert jnp.allclose(c_t, c_r, atol=3e-2, rtol=3e-2)

    # f32 path: pure f32 matmuls, tighter tolerance (slightly relaxed for the MXU f32
    # emulation and the tanh-based sigmoid form).
    out32, h32, c32 = jax.block_until_ready(
        lstm_layer_pallas(x, x_hidden, c, h, params, use_bf16=False)
    )
    assert jnp.allclose(out32, out_r, atol=1e-4, rtol=1e-4)
    assert jnp.allclose(h32, h_r, atol=1e-4, rtol=1e-4)
    assert jnp.allclose(c32, c_r, atol=1e-4, rtol=1e-4)

    print("KERNEL_OK")
</pallas_src>

<mosaic_0001>
module attributes {stable_mosaic.version = 11 : i64} {
  func.func @lstm_kernel(%arg0: i32, %arg1: memref<16x32xf32, #tpu.memory_space<vmem>>, %arg2: memref<16x16xf32, #tpu.memory_space<vmem>>, %arg3: memref<16x32xf32, #tpu.memory_space<vmem>>, %arg4: memref<16x32xf32, #tpu.memory_space<vmem>>, %arg5: memref<32x512xbf16, #tpu.memory_space<vmem>>, %arg6: memref<16x512xbf16, #tpu.memory_space<vmem>>, %arg7: memref<1x512xf32, #tpu.memory_space<vmem>>, %arg8: memref<32x8xbf16, #tpu.memory_space<vmem>>, %arg9: memref<32x8xbf16, #tpu.memory_space<vmem>>, %arg10: memref<1x8xf32, #tpu.memory_space<vmem>>, %arg11: memref<16x8xf32, #tpu.memory_space<vmem>>, %arg12: memref<16x32xf32, #tpu.memory_space<vmem>>, %arg13: memref<16x32xf32, #tpu.memory_space<vmem>>) attributes {dimension_semantics = [#tpu.dimension_semantics<parallel>], iteration_bounds = array<i64: 1>, scalar_prefetch = 0 : i64, scratch_operands = 0 : i64, tpu.core_type = #tpu.core_type<tc>, window_params = [{transform_indices = @transform_0, window_bounds = array<i64: 16, 32>}, {transform_indices = @transform_1, window_bounds = array<i64: 16, 16>}, {transform_indices = @transform_2, window_bounds = array<i64: 16, 32>}, {transform_indices = @transform_3, window_bounds = array<i64: 16, 32>}, {pipeline_mode = #tpu.pipeline_mode<synchronous>, transform_indices = @transform_4, window_bounds = array<i64: 32, 512>}, {pipeline_mode = #tpu.pipeline_mode<synchronous>, transform_indices = @transform_5, window_bounds = array<i64: 16, 512>}, {pipeline_mode = #tpu.pipeline_mode<synchronous>, transform_indices = @transform_6, window_bounds = array<i64: 1, 512>}, {pipeline_mode = #tpu.pipeline_mode<synchronous>, transform_indices = @transform_7, window_bounds = array<i64: 32, 8>}, {pipeline_mode = #tpu.pipeline_mode<synchronous>, transform_indices = @transform_8, window_bounds = array<i64: 32, 8>}, {pipeline_mode = #tpu.pipeline_mode<synchronous>, transform_indices = @transform_9, window_bounds = array<i64: 1, 8>}, {transform_indices = @transform_10, window_bounds = array<i64: 16, 8>}, {transform_indices = @transform_11, window_bounds = array<i64: 16, 32>}, {transform_indices = @transform_12, window_bounds = array<i64: 16, 32>}]} {
    %c0 = arith.constant 0 : index
    %c0_0 = arith.constant 0 : index
    %0 = vector.load %arg1[%c0, %c0_0] : memref<16x32xf32, #tpu.memory_space<vmem>>, vector<16x32xf32>
    %1 = arith.truncf %0 : vector<16x32xf32> to vector<16x32xbf16>
    %c0_1 = arith.constant 0 : index
    %c0_2 = arith.constant 0 : index
    %2 = vector.load %arg2[%c0_1, %c0_2] : memref<16x16xf32, #tpu.memory_space<vmem>>, vector<16x16xf32>
    %3 = arith.truncf %2 : vector<16x16xf32> to vector<16x16xbf16>
    %c0_3 = arith.constant 0 : index
    %c0_4 = arith.constant 0 : index
    %4 = vector.load %arg4[%c0_3, %c0_4] : memref<16x32xf32, #tpu.memory_space<vmem>>, vector<16x32xf32>
    %c0_5 = arith.constant 0 : index
    %c0_6 = arith.constant 0 : index
    %5 = vector.load %arg5[%c0_5, %c0_6] : memref<32x512xbf16, #tpu.memory_space<vmem>>, vector<32x256xbf16>
    %cst = arith.constant dense<0.000000e+00> : vector<16x256xf32>
    %6 = tpu.matmul %1, %5, %cst {dimension_numbers = #tpu.dot_dimension_numbers<[1], [0], [0], [1], [0, 0, 1, 1], [], []>} : vector<16x32xbf16>, vector<32x256xbf16>, vector<16x256xf32> -> vector<16x256xf32>
    %c0_7 = arith.constant 0 : index
    %c0_8 = arith.constant 0 : index
    %7 = vector.load %arg6[%c0_7, %c0_8] : memref<16x512xbf16, #tpu.memory_space<vmem>>, vector<16x256xbf16>
    %cst_9 = arith.constant dense<0.000000e+00> : vector<16x256xf32>
    %8 = tpu.matmul %3, %7, %cst_9 {dimension_numbers = #tpu.dot_dimension_numbers<[1], [0], [0], [1], [0, 0, 1, 1], [], []>} : vector<16x16xbf16>, vector<16x256xbf16>, vector<16x256xf32> -> vector<16x256xf32>
    %9 = arith.addf %6, %8 : vector<16x256xf32>
    %c0_10 = arith.constant 0 : index
    %c0_11 = arith.constant 0 : index
    %10 = vector.load %arg7[%c0_10, %c0_11] : memref<1x512xf32, #tpu.memory_space<vmem>>, vector<1x256xf32>
    %11 = vector.broadcast %10 : vector<1x256xf32> to vector<16x256xf32>
    %12 = arith.addf %9, %11 : vector<16x256xf32>
    %13 = vector.extract_strided_slice %12 {offsets = [0, 0], sizes = [16, 32], strides = [1, 1]} : vector<16x256xf32> to vector<16x32xf32>
    %cst_12 = arith.constant 5.000000e-01 : f32
    %14 = vector.broadcast %cst_12 : f32 to vector<16x32xf32>
    %15 = arith.mulf %14, %13 : vector<16x32xf32>
    %16 = math.tanh %15 : vector<16x32xf32>
    %cst_13 = arith.constant 1.000000e+00 : f32
    %17 = vector.broadcast %cst_13 : f32 to vector<16x32xf32>
    %18 = arith.addf %16, %17 : vector<16x32xf32>
    %cst_14 = arith.constant 5.000000e-01 : f32
    %19 = vector.broadcast %cst_14 : f32 to vector<16x32xf32>
    %20 = arith.mulf %19, %18 : vector<16x32xf32>
    %21 = vector.extract_strided_slice %12 {offsets = [0, 128], sizes = [16, 32], strides = [1, 1]} : vector<16x256xf32> to vector<16x32xf32>
    %cst_15 = arith.constant 5.000000e-01 : f32
    %22 = vector.broadcast %cst_15 : f32 to vector<16x32xf32>
    %23 = arith.mulf %22, %21 : vector<16x32xf32>
    %24 = math.tanh %23 : vector<16x32xf32>
    %cst_16 = arith.constant 1.000000e+00 : f32
    %25 = vector.broadcast %cst_16 : f32 to vector<16x32xf32>
    %26 = arith.addf %24, %25 : vector<16x32xf32>
    %cst_17 = arith.constant 5.000000e-01 : f32
    %27 = vector.broadcast %cst_17 : f32 to vector<16x32xf32>
    %28 = arith.mulf %27, %26 : vector<16x32xf32>
    %c0_18 = arith.constant 0 : index
    %c256 = arith.constant 256 : index
    %29 = vector.load %arg5[%c0_18, %c256] : memref<32x512xbf16, #tpu.memory_space<vmem>>, vector<32x256xbf16>
    %cst_19 = arith.constant dense<0.000000e+00> : vector<16x256xf32>
    %30 = tpu.matmul %1, %29, %cst_19 {dimension_numbers = #tpu.dot_dimension_numbers<[1], [0], [0], [1], [0, 0, 1, 1], [], []>} : vector<16x32xbf16>, vector<32x256xbf16>, vector<16x256xf32> -> vector<16x256xf32>
    %c0_20 = arith.constant 0 : index
    %c256_21 = arith.constant 256 : index
    %31 = vector.load %arg6[%c0_20, %c256_21] : memref<16x512xbf16, #tpu.memory_space<vmem>>, vector<16x256xbf16>
    %cst_22 = arith.constant dense<0.000000e+00> : vector<16x256xf32>
    %32 = tpu.matmul %3, %31, %cst_22 {dimension_numbers = #tpu.dot_dimension_numbers<[1], [0], [0], [1], [0, 0, 1, 1], [], []>} : vector<16x16xbf16>, vector<16x256xbf16>, vector<16x256xf32> -> vector<16x256xf32>
    %33 = arith.addf %30, %32 : vector<16x256xf32>
    %c0_23 = arith.constant 0 : index
    %c256_24 = arith.constant 256 : index
    %34 = vector.load %arg7[%c0_23, %c256_24] : memref<1x512xf32, #tpu.memory_space<vmem>>, vector<1x256xf32>
    %35 = vector.broadcast %34 : vector<1x256xf32> to vector<16x256xf32>
    %36 = arith.addf %33, %35 : vector<16x256xf32>
    %37 = vector.extract_strided_slice %36 {offsets = [0, 128], sizes = [16, 32], strides = [1, 1]} : vector<16x256xf32> to vector<16x32xf32>
    %38 = math.tanh %37 : vector<16x32xf32>
    %39 = arith.mulf %20, %4 : vector<16x32xf32>
    %40 = arith.mulf %28, %38 : vector<16x32xf32>
    %41 = arith.addf %39, %40 : vector<16x32xf32>
    %42 = vector.extract_strided_slice %36 {offsets = [0, 0], sizes = [16, 32], strides = [1, 1]} : vector<16x256xf32> to vector<16x32xf32>
    %cst_25 = arith.constant 5.000000e-01 : f32
    %43 = vector.broadcast %cst_25 : f32 to vector<16x32xf32>
    %44 = arith.mulf %43, %42 : vector<16x32xf32>
    %45 = math.tanh %44 : vector<16x32xf32>
    %cst_26 = arith.constant 1.000000e+00 : f32
    %46 = vector.broadcast %cst_26 : f32 to vector<16x32xf32>
    %47 = arith.addf %45, %46 : vector<16x32xf32>
    %cst_27 = arith.constant 5.000000e-01 : f32
    %48 = vector.broadcast %cst_27 : f32 to vector<16x32xf32>
    %49 = arith.mulf %48, %47 : vector<16x32xf32>
    %cst_28 = arith.constant 0.000000e+00 : f32
    %50 = vector.broadcast %cst_28 : f32 to vector<16x32xf32>
    %51 = arith.maximumf %41, %50 : vector<16x32xf32>
    %52 = arith.mulf %49, %51 : vector<16x32xf32>
    %c0_29 = arith.constant 0 : index
    %c0_30 = arith.constant 0 : index
    %53 = vector.load %arg3[%c0_29, %c0_30] : memref<16x32xf32, #tpu.memory_space<vmem>>, vector<16x32xf32>
    %54 = arith.truncf %53 : vector<16x32xf32> to vector<16x32xbf16>
    %c0_31 = arith.constant 0 : index
    %c0_32 = arith.constant 0 : index
    %55 = vector.load %arg8[%c0_31, %c0_32] : memref<32x8xbf16, #tpu.memory_space<vmem>>, vector<32x8xbf16>
    %cst_33 = arith.constant dense<0.000000e+00> : vector<16x8xf32>
    %56 = tpu.matmul %54, %55, %cst_33 {dimension_numbers = #tpu.dot_dimension_numbers<[1], [0], [0], [1], [0, 0, 1, 1], [], []>} : vector<16x32xbf16>, vector<32x8xbf16>, vector<16x8xf32> -> vector<16x8xf32>
    %57 = arith.truncf %52 : vector<16x32xf32> to vector<16x32xbf16>
    %c0_34 = arith.constant 0 : index
    %c0_35 = arith.constant 0 : index
    %58 = vector.load %arg9[%c0_34, %c0_35] : memref<32x8xbf16, #tpu.memory_space<vmem>>, vector<32x8xbf16>
    %cst_36 = arith.constant dense<0.000000e+00> : vector<16x8xf32>
    %59 = tpu.matmul %57, %58, %cst_36 {dimension_numbers = #tpu.dot_dimension_numbers<[1], [0], [0], [1], [0, 0, 1, 1], [], []>} : vector<16x32xbf16>, vector<32x8xbf16>, vector<16x8xf32> -> vector<16x8xf32>
    %60 = arith.addf %56, %59 : vector<16x8xf32>
    %c0_37 = arith.constant 0 : index
    %c0_38 = arith.constant 0 : index
    %61 = vector.load %arg10[%c0_37, %c0_38] : memref<1x8xf32, #tpu.memory_space<vmem>>, vector<1x8xf32>
    %62 = vector.broadcast %61 : vector<1x8xf32> to vector<16x8xf32>
    %63 = arith.addf %60, %62 : vector<16x8xf32>
    %cst_39 = arith.constant 0.000000e+00 : f32
    %64 = vector.broadcast %cst_39 : f32 to vector<16x8xf32>
    %65 = arith.maximumf %63, %64 : vector<16x8xf32>
    %c0_40 = arith.constant 0 : index
    %c0_41 = arith.constant 0 : index
    %66 = vector.load %arg11[%c0_40, %c0_41] : memref<16x8xf32, #tpu.memory_space<vmem>>, vector<16x8xf32>
    tpu.vector_store %arg11[%c0_40, %c0_41], %65 {strides = array<i32>} : memref<16x8xf32, #tpu.memory_space<vmem>>, vector<16x8xf32>,
    %c0_42 = arith.constant 0 : index
    %c0_43 = arith.constant 0 : index
    %67 = vector.load %arg12[%c0_42, %c0_43] : memref<16x32xf32, #tpu.memory_space<vmem>>, vector<16x32xf32>
    tpu.vector_store %arg12[%c0_42, %c0_43], %52 {strides = array<i32>} : memref<16x32xf32, #tpu.memory_space<vmem>>, vector<16x32xf32>,
    %c0_44 = arith.constant 0 : index
    %c0_45 = arith.constant 0 : index
    %68 = vector.load %arg13[%c0_44, %c0_45] : memref<16x32xf32, #tpu.memory_space<vmem>>, vector<16x32xf32>
    tpu.vector_store %arg13[%c0_44, %c0_45], %41 {strides = array<i32>} : memref<16x32xf32, #tpu.memory_space<vmem>>, vector<16x32xf32>,
    return
  }
  func.func @transform_0(%arg0: i32) -> (i32, i32) {
    %c0_i32 = arith.constant 0 : i32
    %c0_i32_0 = arith.constant 0 : i32
    return %arg0, %c0_i32 : i32, i32
  }
  func.func @transform_1(%arg0: i32) -> (i32, i32) {
    %c0_i32 = arith.constant 0 : i32
    %c0_i32_0 = arith.constant 0 : i32
    return %arg0, %c0_i32 : i32, i32
  }
  func.func @transform_2(%arg0: i32) -> (i32, i32) {
    %c0_i32 = arith.constant 0 : i32
    %c0_i32_0 = arith.constant 0 : i32
    return %arg0, %c0_i32 : i32, i32
  }
  func.func @transform_3(%arg0: i32) -> (i32, i32) {
    %c0_i32 = arith.constant 0 : i32
    %c0_i32_0 = arith.constant 0 : i32
    return %arg0, %c0_i32 : i32, i32
  }
  func.func @transform_4(%arg0: i32) -> (i32, i32) {
    %c0_i32 = arith.constant 0 : i32
    %c0_i32_0 = arith.constant 0 : i32
    %c0_i32_1 = arith.constant 0 : i32
    return %c0_i32, %c0_i32_0 : i32, i32
  }
  func.func @transform_5(%arg0: i32) -> (i32, i32) {
    %c0_i32 = arith.constant 0 : i32
    %c0_i32_0 = arith.constant 0 : i32
    %c0_i32_1 = arith.constant 0 : i32
    return %c0_i32, %c0_i32_0 : i32, i32
  }
  func.func @transform_6(%arg0: i32) -> (i32, i32) {
    %c0_i32 = arith.constant 0 : i32
    %c0_i32_0 = arith.constant 0 : i32
    %c0_i32_1 = arith.constant 0 : i32
    return %c0_i32, %c0_i32_0 : i32, i32
  }
  func.func @transform_7(%arg0: i32) -> (i32, i32) {
    %c0_i32 = arith.constant 0 : i32
    %c0_i32_0 = arith.constant 0 : i32
    %c0_i32_1 = arith.constant 0 : i32
    return %c0_i32, %c0_i32_0 : i32, i32
  }
  func.func @transform_8(%arg0: i32) -> (i32, i32) {
    %c0_i32 = arith.constant 0 : i32
    %c0_i32_0 = arith.constant 0 : i32
    %c0_i32_1 = arith.constant 0 : i32
    return %c0_i32, %c0_i32_0 : i32, i32
  }
  func.func @transform_9(%arg0: i32) -> (i32, i32) {
    %c0_i32 = arith.constant 0 : i32
    %c0_i32_0 = arith.constant 0 : i32
    %c0_i32_1 = arith.constant 0 : i32
    return %c0_i32, %c0_i32_0 : i32, i32
  }
  func.func @transform_10(%arg0: i32) -> (i32, i32) {
    %c0_i32 = arith.constant 0 : i32
    %c0_i32_0 = arith.constant 0 : i32
    return %arg0, %c0_i32 : i32, i32
  }
  func.func @transform_11(%arg0: i32) -> (i32, i32) {
    %c0_i32 = arith.constant 0 : i32
    %c0_i32_0 = arith.constant 0 : i32
    return %arg0, %c0_i32 : i32, i32
  }
  func.func @transform_12(%arg0: i32) -> (i32, i32) {
    %c0_i32 = arith.constant 0 : i32
    %c0_i32_0 = arith.constant 0 : i32
    return %arg0, %c0_i32 : i32, i32
  }
}

</mosaic_0001>

<llo_original>
// kernel: tpu_custom_call.1
$region0: #{tpu_custom_call.1}
  #allocation0 [shape = 'u32[]', space=smem, size = 0x4, offset = 0x4, fixed_abs, tag = 'smem constant byte address 0x4 - core index']
  #allocation1 [shape = 'u32[144,128]{1,0:T(1,128)}', space=vmem, size = 0x12000, scoped, tag = 'internal scratch']
  %s0 = inlined_call_operand.vmem [shape: f32[16,32], index: 0, kind: input, shape index: {}]
  %s1 = inlined_call_operand.hbm [shape: f32[16,16], index: 1, kind: input, shape index: {}]
  %s2 = inlined_call_operand.hbm [shape: f32[16,32], index: 2, kind: input, shape index: {}]
  %s3 = inlined_call_operand.hbm [shape: f32[16,32], index: 3, kind: input, shape index: {}]
  %s4 = inlined_call_operand.hbm [shape: bf16[32,512], index: 4, kind: input, shape index: {}]
  %s5 = inlined_call_operand.vmem [shape: bf16[16,512], index: 5, kind: input, shape index: {}]
  %s6 = inlined_call_operand.vmem [shape: f32[1,512], index: 6, kind: input, shape index: {}]
  %s7 = inlined_call_operand.vmem [shape: bf16[32,8], index: 7, kind: input, shape index: {}]
  %s8 = inlined_call_operand.vmem [shape: bf16[32,8], index: 8, kind: input, shape index: {}]
  %s9 = inlined_call_operand.vmem [shape: f32[1,8], index: 9, kind: input, shape index: {}]
  %s10 = inlined_call_operand.vmem [shape: f32[16,8], index: 10, kind: output, shape index: {0}]
  %s11 = inlined_call_operand.hbm [shape: f32[16,32], index: 11, kind: output, shape index: {1}]
  %s12 = inlined_call_operand.hbm [shape: f32[16,32], index: 12, kind: output, shape index: {2}]
  %13 = xla_tuple %s10, %s11, %s12
  %s14 = sld [smem:[#allocation0]]
  $region82: #{tpu_custom_call.1} parent=0
    _
  %s16 = ssub.s32 1, %s14
  %s17 = scalar_select 0, %s16, %s14
  $region1: #{tpu_custom_call.1} parent=0
    #allocation2 [shape = 'u8[8192]{0}', space=vmem, size = 0x2000, scoped, tag = 'input window, operand 1, single buffered']
    #allocation3 [shape = 's32[1]{0}', space=sflag, size = 0x4, scoped, tag = 'scoped memory for tpu_custom_call.1']
    #allocation4 [shape = 's32[1]{0}', space=sflag, size = 0x4, scoped, tag = 'scoped memory for tpu_custom_call.1']
    #allocation5 [shape = 'u8[8192]{0}', space=vmem, size = 0x2000, scoped, tag = 'input window, operand 2, single buffered']
    #allocation6 [shape = 's32[1]{0}', space=sflag, size = 0x4, scoped, tag = 'scoped memory for tpu_custom_call.1']
    #allocation7 [shape = 'u8[8192]{0}', space=vmem, size = 0x2000, scoped, tag = 'input window, operand 3, single buffered']
    #allocation8 [shape = 'u8[32768]{0}', space=vmem, size = 0x8000, scoped, tag = 'input window, operand 4, single buffered']
    #allocation9 [shape = 's32[1]{0}', space=sflag, size = 0x4, scoped, tag = 'scoped memory for tpu_custom_call.1']
    #allocation10 [shape = 'u8[8192]{0}', space=vmem, size = 0x2000, scoped, tag = 'output window, operand 1, single buffered']
    #allocation11 [shape = 'u8[8192]{0}', space=vmem, size = 0x2000, scoped, tag = 'output window, operand 2, single buffered']
    #allocation12 [shape = 's32[1]{0}', space=sflag, size = 0x4, scoped, tag = 'scoped memory for tpu_custom_call.1']
    %18 = vsyncpa [#allocation3], 0
    %19 = vsyncpa [#allocation6], 0
    %20 = vsyncpa [#allocation9], 0
    %21 = vsyncpa [#allocation4], 0
    %22 = vsyncpa [#allocation12], 0
    // Predicated region
    $region2: #{tpu_custom_call.1} parent=1 // pred_check
      _
    $region3: #{tpu_custom_call.1} parent=1 // pred_check_branch
      %24 = sbr.rel (0) target = $region5
    $region4: #{tpu_custom_call.1} parent=1 // pred_region
      _
    $region5: #{tpu_custom_call.1} parent=1 // pred_fallthru
      _
    // Predicated region
    $region6: #{tpu_custom_call.1} parent=1 // pred_check
      _
    $region7: #{tpu_custom_call.1} parent=1 // pred_check_branch
      %26 = sbr.rel (0) target = $region9
    $region8: #{tpu_custom_call.1} parent=1 // pred_region
      %s28 = ssub.s32 256, 256
      %29 = vsyncadd [#allocation3], %s28
      %s30 = sshll.u32 [#allocation2], 4
      %s31 = int_to_ptr.vmem [resolvable:$true] %s30
      %36 = dma.hbm_to_vmem [thread:$0]  %s1, 256, %s31, [#allocation3], 128, 128, 8
    $region9: #{tpu_custom_call.1} parent=1 // pred_fallthru
      _
    // Predicated region
    $region10: #{tpu_custom_call.1} parent=1 // pred_check
      _
    $region11: #{tpu_custom_call.1} parent=1 // pred_check_branch
      %38 = sbr.rel (0) target = $region13
    $region12: #{tpu_custom_call.1} parent=1 // pred_region
      %s40 = ssub.s32 256, 256
      %41 = vsyncadd [#allocation6], %s40
      %s42 = sshll.u32 [#allocation5], 4
      %s43 = int_to_ptr.vmem [resolvable:$true] %s42
      %48 = dma.hbm_to_vmem [thread:$0]  %s2, 256, %s43, [#allocation6], 128, 128, 8
    $region13: #{tpu_custom_call.1} parent=1 // pred_fallthru
      _
    // Predicated region
    $region14: #{tpu_custom_call.1} parent=1 // pred_check
      _
    $region15: #{tpu_custom_call.1} parent=1 // pred_check_branch
      %50 = sbr.rel (0) target = $region17
    $region16: #{tpu_custom_call.1} parent=1 // pred_region
      %s52 = ssub.s32 256, 256
      %53 = vsyncadd [#allocation6], %s52
      %s54 = sshll.u32 [#allocation7], 4
      %s55 = int_to_ptr.vmem [resolvable:$true] %s54
      %60 = dma.hbm_to_vmem [thread:$0]  %s3, 256, %s55, [#allocation6], 128, 128, 8
    $region17: #{tpu_custom_call.1} parent=1 // pred_fallthru
      _
    // Predicated region
    $region18: #{tpu_custom_call.1} parent=1 // pred_check
      _
    $region19: #{tpu_custom_call.1} parent=1 // pred_check_branch
      %62 = sbr.rel (0) target = $region21
    $region20: #{tpu_custom_call.1} parent=1 // pred_region
      %s64 = ssub.s32 1024, 1024
      %65 = vsyncadd [#allocation9], %s64
      %s66 = sshll.u32 [#allocation8], 4
      %s67 = int_to_ptr.vmem [resolvable:$true] %s66
      %72 = dma.hbm_to_vmem [thread:$0]  %s4, 1024, %s67, [#allocation9], 256, 256, 16
    $region21: #{tpu_custom_call.1} parent=1 // pred_fallthru
      _
    // Predicated region
    $region22: #{tpu_custom_call.1} parent=1 // pred_check
      _
    $region23: #{tpu_custom_call.1} parent=1 // pred_check_branch
      %74 = sbr.rel (0) target = $region25
    $region24: #{tpu_custom_call.1} parent=1 // pred_region
      _
    $region25: #{tpu_custom_call.1} parent=1 // pred_fallthru
      _
    // Predicated region
    $region26: #{tpu_custom_call.1} parent=1 // pred_check
      _
    $region27: #{tpu_custom_call.1} parent=1 // pred_check_branch
      %76 = sbr.rel (0) target = $region29
    $region28: #{tpu_custom_call.1} parent=1 // pred_region
      _
    $region29: #{tpu_custom_call.1} parent=1 // pred_fallthru
      _
    // Predicated region
    $region30: #{tpu_custom_call.1} parent=1 // pred_check
      _
    $region31: #{tpu_custom_call.1} parent=1 // pred_check_branch
      %78 = sbr.rel (0) target = $region33
    $region32: #{tpu_custom_call.1} parent=1 // pred_region
      _
    $region33: #{tpu_custom_call.1} parent=1 // pred_fallthru
      _
    // Predicated region
    $region34: #{tpu_custom_call.1} parent=1 // pred_check
      _
    $region35: #{tpu_custom_call.1} parent=1 // pred_check_branch
      %80 = sbr.rel (0) target = $region37
    $region36: #{tpu_custom_call.1} parent=1 // pred_region
      _
    $region37: #{tpu_custom_call.1} parent=1 // pred_fallthru
      _
    // Predicated region
    $region38: #{tpu_custom_call.1} parent=1 // pred_check
      _
    $region39: #{tpu_custom_call.1} parent=1 // pred_check_branch
      %82 = sbr.rel (0) target = $region41
    $region40: #{tpu_custom_call.1} parent=1 // pred_region
      _
    $region41: #{tpu_custom_call.1} parent=1 // pred_fallthru
      _
    // Predicated region
    $region42: #{tpu_custom_call.1} parent=1 // pred_check
      _
    $region43: #{tpu_custom_call.1} parent=1 // pred_check_branch
      %84 = sbr.rel (0) target = $region45
    $region44: #{tpu_custom_call.1} parent=1 // pred_region
      %85 = dma.done [#allocation3], 256
    $region45: #{tpu_custom_call.1} parent=1 // pred_fallthru
      _
    // Predicated region
    $region46: #{tpu_custom_call.1} parent=1 // pred_check
      _
    $region47: #{tpu_custom_call.1} parent=1 // pred_check_branch
      %87 = sbr.rel (0) target = $region49
    $region48: #{tpu_custom_call.1} parent=1 // pred_region
      %88 = dma.done [#allocation6], 256
    $region49: #{tpu_custom_call.1} parent=1 // pred_fallthru
      _
    // Predicated region
    $region50: #{tpu_custom_call.1} parent=1 // pred_check
      _
    $region51: #{tpu_custom_call.1} parent=1 // pred_check_branch
      %90 = sbr.rel (0) target = $region53
    $region52: #{tpu_custom_call.1} parent=1 // pred_region
      %91 = dma.done [#allocation6], 256
    $region53: #{tpu_custom_call.1} parent=1 // pred_fallthru
      _
    // Predicated region
    $region54: #{tpu_custom_call.1} parent=1 // pred_check
      _
    $region55: #{tpu_custom_call.1} parent=1 // pred_check_branch
      %93 = sbr.rel (0) target = $region57
    $region56: #{tpu_custom_call.1} parent=1 // pred_region
      %94 = dma.done [#allocation9], 1024
    $region57: #{tpu_custom_call.1} parent=1 // pred_fallthru
      _
    %v96 = vld [vmem:[%s0] sm:$0xff]
    %v97 = vld [vmem:[%s0 + $0x8] sm:$0xff]
    %v98 = vpack.c.bf16 %v97, %v96
    %v99 = vld [vmem:[#allocation2] sm:$0xff]
    %v100 = vld [vmem:[#allocation2 + $0x8] sm:$0xff]
    %v101 = vpack.c.bf16 %v100, %v99
    %v102 = vld [vmem:[#allocation7] sm:$0xff]
    %v103 = vld [vmem:[#allocation7 + $0x8] sm:$0xff]
    %v104 = vld [vmem:[#allocation8] sm:$0xff]
    %v105 = vld [vmem:[#allocation8 + $0x10] sm:$0xff]
    %v106 = vld [vmem:[#allocation8 + $0x20] sm:$0xff]
    %v107 = vld [vmem:[#allocation8 + $0x30] sm:$0xff]
    %v108 = vld [vmem:[%s5] sm:$0xff]
    %v109 = vld [vmem:[%s5 + $0x10] sm:$0xff]
    %v112 = vunpack.c.l.b16 %v108
    %v113 = vunpack.c.h.b16 %v108
    %v114 = vunpack.c.l.b16 %v109
    %v115 = vunpack.c.h.b16 %v109
    %v116 = vpack.c.b16 %v114, %v112
    %v117 = vpack.c.b16 %v115, %v113
    %vm120 = vcmask 130048
    %v122 = vsel %vm120, %v101, 0
    %124 = vmatprep.subr.bf16.mxu0 %v117
    %125 = vmatpush1.bf16.msra.mxu0 %v116
    %126 = vmatprep.subr.bf16.mxu0 0
    %127 = vmatpush1.bf16.msra.mxu0 0
    %128 = vmatprep.subr.bf16.mxu0 0
    %129 = vmatpush1.bf16.msra.mxu0 0
    %130 = vmatprep.subr.bf16.mxu0 0
    %131 = vmatpush1.bf16.msra.mxu0 0
    %132 = vmatprep.subr.bf16.mxu0 0
    %133 = vmatpush1.bf16.msra.mxu0 0
    %134 = vmatprep.subr.bf16.mxu0 0
    %135 = vmatpush1.bf16.msra.mxu0 0
    %136 = vmatprep.subr.bf16.mxu0 0
    %137 = vmatpush1.bf16.msra.mxu0 0
    %138 = vmatprep.subr.bf16.mxu0 0
    %139 = vmatpush1.bf16.msra.mxu0 0
    %140 = vmatprep.subr.bf16.mxu0 0
    %141 = vmatpush1.bf16.msra.mxu0 0
    %142 = vmatprep.subr.bf16.mxu0 0
    %143 = vmatpush1.bf16.msra.mxu0 0
    %144 = vmatprep.subr.bf16.mxu0 0
    %145 = vmatpush1.bf16.msra.mxu0 0
    %146 = vmatprep.subr.bf16.mxu0 0
    %147 = vmatpush1.bf16.msra.mxu0 0
    %148 = vmatprep.subr.bf16.mxu0 0
    %149 = vmatpush1.bf16.msra.mxu0 0
    %150 = vmatprep.subr.bf16.mxu0 0
    %151 = vmatpush1.bf16.msra.mxu0 0
    %152 = vmatprep.subr.bf16.mxu0 0
    %153 = vmatpush1.bf16.msra.mxu0 0
    %154 = vmatprep.subr.bf16.mxu0 0
    %155 = vmatpush1.bf16.msra.mxu0 0
    %156 = vmatprep.mubr.bf16.mxu0 0
    %157 = vmatmul.mubr.bf16.gmra.mrb[0].mxu0 %v122
    %v158 = vpop.f32.mrb[0].mxu0
    %v159 = vadd.f32 0.0, %v158
    %v160 = vpop.f32.mrb[0].mxu0
    %v161 = vadd.f32 0.0, %v160
    %v162 = vpop.f32.mrb[0].mxu0
    %v163 = vadd.f32 0.0, %v162
    %v164 = vpop.f32.mrb[0].mxu0
    %v165 = vadd.f32 0.0, %v164
    %166 = vdwg.mxu0
    %v171 = vunpack.c.l.b16 %v104
    %v172 = vunpack.c.h.b16 %v104
    %v173 = vunpack.c.l.b16 %v105
    %v174 = vunpack.c.h.b16 %v105
    %v175 = vunpack.c.l.b16 %v106
    %v176 = vunpack.c.h.b16 %v106
    %v177 = vunpack.c.l.b16 %v107
    %v178 = vunpack.c.h.b16 %v107
    %v179 = vpack.c.b16 %v173, %v171
    %v180 = vpack.c.b16 %v174, %v172
    %v181 = vpack.c.b16 %v177, %v175
    %v182 = vpack.c.b16 %v178, %v176
    %vm187 = vcmask 261120
    %v189 = vsel %vm187, %v98, 0
    %191 = vmatprep.subr.bf16.mxu0 %v180
    %192 = vmatpush1.bf16.msra.mxu0 %v179
    %193 = vmatprep.subr.bf16.mxu0 %v182
    %194 = vmatpush1.bf16.msra.mxu0 %v181
    %195 = vmatprep.subr.bf16.mxu0 0
    %196 = vmatpush1.bf16.msra.mxu0 0
    %197 = vmatprep.subr.bf16.mxu0 0
    %198 = vmatpush1.bf16.msra.mxu0 0
    %199 = vmatprep.subr.bf16.mxu0 0
    %200 = vmatpush1.bf16.msra.mxu0 0
    %201 = vmatprep.subr.bf16.mxu0 0
    %202 = vmatpush1.bf16.msra.mxu0 0
    %203 = vmatprep.subr.bf16.mxu0 0
    %204 = vmatpush1.bf16.msra.mxu0 0
    %205 = vmatprep.subr.bf16.mxu0 0
    %206 = vmatpush1.bf16.msra.mxu0 0
    %207 = vmatprep.subr.bf16.mxu0 0
    %208 = vmatpush1.bf16.msra.mxu0 0
    %209 = vmatprep.subr.bf16.mxu0 0
    %210 = vmatpush1.bf16.msra.mxu0 0
    %211 = vmatprep.subr.bf16.mxu0 0
    %212 = vmatpush1.bf16.msra.mxu0 0
    %213 = vmatprep.subr.bf16.mxu0 0
    %214 = vmatpush1.bf16.msra.mxu0 0
    %215 = vmatprep.subr.bf16.mxu0 0
    %216 = vmatpush1.bf16.msra.mxu0 0
    %217 = vmatprep.subr.bf16.mxu0 0
    %218 = vmatpush1.bf16.msra.mxu0 0
    %219 = vmatprep.subr.bf16.mxu0 0
    %220 = vmatpush1.bf16.msra.mxu0 0
    %221 = vmatprep.subr.bf16.mxu0 0
    %222 = vmatpush1.bf16.msra.mxu0 0
    %223 = vmatprep.mubr.bf16.mxu0 0
    %224 = vmatmul.mubr.bf16.gmra.mrb[0].mxu0 %v189
    %v225 = vpop.f32.mrb[0].mxu0
    %v226 = vadd.f32 %v159, %v225
    %v227 = vpop.f32.mrb[0].mxu0
    %v228 = vadd.f32 %v161, %v227
    %v229 = vpop.f32.mrb[0].mxu0
    %v230 = vadd.f32 %v163, %v229
    %v231 = vpop.f32.mrb[0].mxu0
    %v232 = vadd.f32 %v165, %v231
    %233 = vdwg.mxu0
    %v234 = vld [vmem:[%s6] sm:$0x3]
    %v236 = vlaneseq
    %v237 = vshrl.u32 %v236, 7
    %v238 = vsub.s32 0, %v237
    %v239 = vrot.slane %v234, %v238
    %v240 = vlaneseq
    %v241 = vshrl.u32 %v240, 7
    %v242 = vsub.s32 1, %v241
    %v243 = vrot.slane %v234, %v242
    %v246 = vadd.f32 %v226, %v239
    %v247 = vadd.f32 %v228, %v243
    %v248 = vadd.f32 %v230, %v239
    %v249 = vadd.f32 %v232, %v243
    %v250 = vmul.f32 %v246, 0.5
    %v251 = vmul.f32 %v248, 0.5
    %v252 = vtanh.pop %v250
    %v253 = vtanh.pop %v251
    %v254 = vadd.f32 %v252, 1.0
    %v255 = vadd.f32 %v253, 1.0
    %v256 = vmul.f32 %v254, 0.5
    %v257 = vmul.f32 %v255, 0.5
    %v258 = vmul.f32 %v247, 0.5
    %v259 = vmul.f32 %v249, 0.5
    %v260 = vtanh.pop %v258
    %v261 = vtanh.pop %v259
    %v262 = vadd.f32 %v260, 1.0
    %v263 = vadd.f32 %v261, 1.0
    %v264 = vmul.f32 %v262, 0.5
    %v265 = vmul.f32 %v263, 0.5
    %v266 = vld [vmem:[#allocation8 + $0x8] sm:$0xff]
    %v267 = vld [vmem:[#allocation8 + $0x18] sm:$0xff]
    %v268 = vld [vmem:[#allocation8 + $0x28] sm:$0xff]
    %v269 = vld [vmem:[#allocation8 + $0x38] sm:$0xff]
    %v270 = vld [vmem:[%s5 + $0x8] sm:$0xff]
    %v271 = vld [vmem:[%s5 + $0x18] sm:$0xff]
    %v274 = vunpack.c.l.b16 %v270
    %v275 = vunpack.c.h.b16 %v270
    %v276 = vunpack.c.l.b16 %v271
    %v277 = vunpack.c.h.b16 %v271
    %v278 = vpack.c.b16 %v276, %v274
    %v279 = vpack.c.b16 %v277, %v275
    %282 = vmatprep.subr.bf16.mxu0 %v279
    %283 = vmatpush1.bf16.msra.mxu0 %v278
    %284 = vmatprep.subr.bf16.mxu0 0
    %285 = vmatpush1.bf16.msra.mxu0 0
    %286 = vmatprep.subr.bf16.mxu0 0
    %287 = vmatpush1.bf16.msra.mxu0 0
    %288 = vmatprep.subr.bf16.mxu0 0
    %289 = vmatpush1.bf16.msra.mxu0 0
    %290 = vmatprep.subr.bf16.mxu0 0
    %291 = vmatpush1.bf16.msra.mxu0 0
    %292 = vmatprep.subr.bf16.mxu0 0
    %293 = vmatpush1.bf16.msra.mxu0 0
    %294 = vmatprep.subr.bf16.mxu0 0
    %295 = vmatpush1.bf16.msra.mxu0 0
    %296 = vmatprep.subr.bf16.mxu0 0
    %297 = vmatpush1.bf16.msra.mxu0 0
    %298 = vmatprep.subr.bf16.mxu0 0
    %299 = vmatpush1.bf16.msra.mxu0 0
    %300 = vmatprep.subr.bf16.mxu0 0
    %301 = vmatpush1.bf16.msra.mxu0 0
    %302 = vmatprep.subr.bf16.mxu0 0
    %303 = vmatpush1.bf16.msra.mxu0 0
    %304 = vmatprep.subr.bf16.mxu0 0
    %305 = vmatpush1.bf16.msra.mxu0 0
    %306 = vmatprep.subr.bf16.mxu0 0
    %307 = vmatpush1.bf16.msra.mxu0 0
    %308 = vmatprep.subr.bf16.mxu0 0
    %309 = vmatpush1.bf16.msra.mxu0 0
    %310 = vmatprep.subr.bf16.mxu0 0
    %311 = vmatpush1.bf16.msra.mxu0 0
    %312 = vmatprep.subr.bf16.mxu0 0
    %313 = vmatpush1.bf16.msra.mxu0 0
    %314 = vmatprep.mubr.bf16.mxu0 0
    %315 = vmatmul.mubr.bf16.gmra.mrb[0].mxu0 %v122
    %v316 = vpop.f32.mrb[0].mxu0
    %v317 = vadd.f32 0.0, %v316
    %v318 = vpop.f32.mrb[0].mxu0
    %v319 = vadd.f32 0.0, %v318
    %v320 = vpop.f32.mrb[0].mxu0
    %v321 = vadd.f32 0.0, %v320
    %v322 = vpop.f32.mrb[0].mxu0
    %v323 = vadd.f32 0.0, %v322
    %324 = vdwg.mxu0
    %v329 = vunpack.c.l.b16 %v266
    %v330 = vunpack.c.h.b16 %v266
    %v331 = vunpack.c.l.b16 %v267
    %v332 = vunpack.c.h.b16 %v267
    %v333 = vunpack.c.l.b16 %v268
    %v334 = vunpack.c.h.b16 %v268
    %v335 = vunpack.c.l.b16 %v269
    %v336 = vunpack.c.h.b16 %v269
    %v337 = vpack.c.b16 %v331, %v329
    %v338 = vpack.c.b16 %v332, %v330
    %v339 = vpack.c.b16 %v335, %v333
    %v340 = vpack.c.b16 %v336, %v334
    %345 = vmatprep.subr.bf16.mxu0 %v338
    %346 = vmatpush1.bf16.msra.mxu0 %v337
    %347 = vmatprep.subr.bf16.mxu0 %v340
    %348 = vmatpush1.bf16.msra.mxu0 %v339
    %349 = vmatprep.subr.bf16.mxu0 0
    %350 = vmatpush1.bf16.msra.mxu0 0
    %351 = vmatprep.subr.bf16.mxu0 0
    %352 = vmatpush1.bf16.msra.mxu0 0
    %353 = vmatprep.subr.bf16.mxu0 0
    %354 = vmatpush1.bf16.msra.mxu0 0
    %355 = vmatprep.subr.bf16.mxu0 0
    %356 = vmatpush1.bf16.msra.mxu0 0
    %357 = vmatprep.subr.bf16.mxu0 0
    %358 = vmatpush1.bf16.msra.mxu0 0
    %359 = vmatprep.subr.bf16.mxu0 0
    %360 = vmatpush1.bf16.msra.mxu0 0
    %361 = vmatprep.subr.bf16.mxu0 0
    %362 = vmatpush1.bf16.msra.mxu0 0
    %363 = vmatprep.subr.bf16.mxu0 0
    %364 = vmatpush1.bf16.msra.mxu0 0
    %365 = vmatprep.subr.bf16.mxu0 0
    %366 = vmatpush1.bf16.msra.mxu0 0
    %367 = vmatprep.subr.bf16.mxu0 0
    %368 = vmatpush1.bf16.msra.mxu0 0
    %369 = vmatprep.subr.bf16.mxu0 0
    %370 = vmatpush1.bf16.msra.mxu0 0
    %371 = vmatprep.subr.bf16.mxu0 0
    %372 = vmatpush1.bf16.msra.mxu0 0
    %373 = vmatprep.subr.bf16.mxu0 0
    %374 = vmatpush1.bf16.msra.mxu0 0
    %375 = vmatprep.subr.bf16.mxu0 0
    %376 = vmatpush1.bf16.msra.mxu0 0
    %377 = vmatprep.mubr.bf16.mxu0 0
    %378 = vmatmul.mubr.bf16.gmra.mrb[0].mxu0 %v189
    %v379 = vpop.f32.mrb[0].mxu0
    %v380 = vadd.f32 %v317, %v379
    %v381 = vpop.f32.mrb[0].mxu0
    %v382 = vadd.f32 %v319, %v381
    %v383 = vpop.f32.mrb[0].mxu0
    %v384 = vadd.f32 %v321, %v383
    %v385 = vpop.f32.mrb[0].mxu0
    %v386 = vadd.f32 %v323, %v385
    %387 = vdwg.mxu0
    %v388 = vld [vmem:[%s6 + $0x2] sm:$0x3]
    %v390 = vlaneseq
    %v391 = vshrl.u32 %v390, 7
    %v392 = vsub.s32 0, %v391
    %v393 = vrot.slane %v388, %v392
    %v394 = vlaneseq
    %v395 = vshrl.u32 %v394, 7
    %v396 = vsub.s32 1, %v395
    %v397 = vrot.slane %v388, %v396
    %v400 = vadd.f32 %v380, %v393
    %v401 = vadd.f32 %v382, %v397
    %v402 = vadd.f32 %v384, %v393
    %v403 = vadd.f32 %v386, %v397
    %v404 = vtanh.pop %v401
    %v405 = vtanh.pop %v403
    %v406 = vmul.f32 %v256, %v102
    %v407 = vmul.f32 %v257, %v103
    %v408 = vmul.f32 %v264, %v404
    %v409 = vmul.f32 %v265, %v405
    %v410 = vadd.f32 %v406, %v408
    %v411 = vadd.f32 %v407, %v409
    %v412 = vmul.f32 %v400, 0.5
    %v413 = vmul.f32 %v402, 0.5
    %v414 = vtanh.pop %v412
    %v415 = vtanh.pop %v413
    %v416 = vadd.f32 %v414, 1.0
    %v417 = vadd.f32 %v415, 1.0
    %v418 = vmul.f32 %v416, 0.5
    %v419 = vmul.f32 %v417, 0.5
    %v420 = vmax.f32 %v410, 0.0
    %v421 = vmax.f32 %v411, 0.0
    %v422 = vmul.f32 %v418, %v420
    %v423 = vmul.f32 %v419, %v421
    %v424 = vld [vmem:[#allocation5] sm:$0xff]
    %v425 = vld [vmem:[#allocation5 + $0x8] sm:$0xff]
    %v426 = vpack.c.bf16 %v425, %v424
    %v427 = vld [vmem:[%s7] sm:$0xf]
    %v428 = vld [vmem:[%s7 + $0x4] sm:$0xf]
    %v429 = vld [vmem:[%s7 + $0x8] sm:$0xf]
    %v430 = vld [vmem:[%s7 + $0xc] sm:$0xf]
    %v431 = vpack.c.bf16 %v423, %v422
    %v432 = vld [vmem:[%s8] sm:$0xf]
    %v433 = vld [vmem:[%s8 + $0x4] sm:$0xf]
    %v434 = vld [vmem:[%s8 + $0x8] sm:$0xf]
    %v435 = vld [vmem:[%s8 + $0xc] sm:$0xf]
    %v440 = vunpack.c.l.b16 %v432
    %v441 = vunpack.c.l.b16 %v433
    %v442 = vunpack.c.l.b16 %v434
    %v443 = vunpack.c.l.b16 %v435
    %v444 = vpack.c.b16 %v441, %v440
    %v445 = vpack.c.b16 %v443, %v442
    %v449 = vsel %vm187, %v431, 0
    %451 = vmatprep.subr.bf16.mxu0 0
    %452 = vmatpush1.bf16.msra.mxu0 %v444
    %453 = vmatprep.subr.bf16.mxu0 0
    %454 = vmatpush1.bf16.msra.mxu0 %v445
    %455 = vmatprep.subr.bf16.mxu0 0
    %456 = vmatpush1.bf16.msra.mxu0 0
    %457 = vmatprep.subr.bf16.mxu0 0
    %458 = vmatpush1.bf16.msra.mxu0 0
    %459 = vmatprep.subr.bf16.mxu0 0
    %460 = vmatpush1.bf16.msra.mxu0 0
    %461 = vmatprep.subr.bf16.mxu0 0
    %462 = vmatpush1.bf16.msra.mxu0 0
    %463 = vmatprep.subr.bf16.mxu0 0
    %464 = vmatpush1.bf16.msra.mxu0 0
    %465 = vmatprep.subr.bf16.mxu0 0
    %466 = vmatpush1.bf16.msra.mxu0 0
    %467 = vmatprep.subr.bf16.mxu0 0
    %468 = vmatpush1.bf16.msra.mxu0 0
    %469 = vmatprep.subr.bf16.mxu0 0
    %470 = vmatpush1.bf16.msra.mxu0 0
    %471 = vmatprep.subr.bf16.mxu0 0
    %472 = vmatpush1.bf16.msra.mxu0 0
    %473 = vmatprep.subr.bf16.mxu0 0
    %474 = vmatpush1.bf16.msra.mxu0 0
    %475 = vmatprep.subr.bf16.mxu0 0
    %476 = vmatpush1.bf16.msra.mxu0 0
    %477 = vmatprep.subr.bf16.mxu0 0
    %478 = vmatpush1.bf16.msra.mxu0 0
    %479 = vmatprep.subr.bf16.mxu0 0
    %480 = vmatpush1.bf16.msra.mxu0 0
    %481 = vmatprep.subr.bf16.mxu0 0
    %482 = vmatpush1.bf16.msra.mxu0 0
    %483 = vmatprep.mubr.bf16.mxu0 0
    %484 = vmatmul.mubr.bf16.gmra.mrb[0].mxu0 %v449
    %v485 = vpop.f32.mrb[0].mxu0
    %v486 = vadd.f32 0.0, %v485
    %v487 = vpop.f32.mrb[0].mxu0
    %v488 = vpop.f32.mrb[0].mxu0
    %v489 = vadd.f32 0.0, %v488
    %v490 = vpop.f32.mrb[0].mxu0
    %491 = vdwg.mxu0
    %v496 = vunpack.c.l.b16 %v427
    %v497 = vunpack.c.l.b16 %v428
    %v498 = vunpack.c.l.b16 %v429
    %v499 = vunpack.c.l.b16 %v430
    %v500 = vpack.c.b16 %v497, %v496
    %v501 = vpack.c.b16 %v499, %v498
    %v505 = vsel %vm187, %v426, 0
    %507 = vmatprep.subr.bf16.mxu0 0
    %508 = vmatpush1.bf16.msra.mxu0 %v500
    %509 = vmatprep.subr.bf16.mxu0 0
    %510 = vmatpush1.bf16.msra.mxu0 %v501
    %511 = vmatprep.subr.bf16.mxu0 0
    %512 = vmatpush1.bf16.msra.mxu0 0
    %513 = vmatprep.subr.bf16.mxu0 0
    %514 = vmatpush1.bf16.msra.mxu0 0
    %515 = vmatprep.subr.bf16.mxu0 0
    %516 = vmatpush1.bf16.msra.mxu0 0
    %517 = vmatprep.subr.bf16.mxu0 0
    %518 = vmatpush1.bf16.msra.mxu0 0
    %519 = vmatprep.subr.bf16.mxu0 0
    %520 = vmatpush1.bf16.msra.mxu0 0
    %521 = vmatprep.subr.bf16.mxu0 0
    %522 = vmatpush1.bf16.msra.mxu0 0
    %523 = vmatprep.subr.bf16.mxu0 0
    %524 = vmatpush1.bf16.msra.mxu0 0
    %525 = vmatprep.subr.bf16.mxu0 0
    %526 = vmatpush1.bf16.msra.mxu0 0
    %527 = vmatprep.subr.bf16.mxu0 0
    %528 = vmatpush1.bf16.msra.mxu0 0
    %529 = vmatprep.subr.bf16.mxu0 0
    %530 = vmatpush1.bf16.msra.mxu0 0
    %531 = vmatprep.subr.bf16.mxu0 0
    %532 = vmatpush1.bf16.msra.mxu0 0
    %533 = vmatprep.subr.bf16.mxu0 0
    %534 = vmatpush1.bf16.msra.mxu0 0
    %535 = vmatprep.subr.bf16.mxu0 0
    %536 = vmatpush1.bf16.msra.mxu0 0
    %537 = vmatprep.subr.bf16.mxu0 0
    %538 = vmatpush1.bf16.msra.mxu0 0
    %539 = vmatprep.mubr.bf16.mxu0 0
    %540 = vmatmul.mubr.bf16.gmra.mrb[0].mxu0 %v505
    %v541 = vpop.f32.mrb[0].mxu0
    %v542 = vadd.f32 %v486, %v541
    %v543 = vpop.f32.mrb[0].mxu0
    %v544 = vpop.f32.mrb[0].mxu0
    %v545 = vadd.f32 %v489, %v544
    %v546 = vpop.f32.mrb[0].mxu0
    %547 = vdwg.mxu0
    %v548 = vld [vmem:[%s9] sm:$0x1]
    %v550 = vlaneseq
    %v551 = vshrl.u32 %v550, 7
    %v552 = vsub.s32 0, %v551
    %v553 = vrot.slane %v548, %v552
    %v555 = vadd.f32 %v542, %v553
    %v556 = vadd.f32 %v545, %v553
    %v557 = vmax.f32 %v555, 0.0
    %v558 = vmax.f32 %v556, 0.0
    %vm559 = vcmask 64512
    %560 = vst.msk [vmem:[%s10] sm:$0xff] %vm559, %v557
    %561 = vst.msk [vmem:[%s10 + $0x8] sm:$0xff] %vm559, %v558
    %562 = vst.msk [vmem:[#allocation10] sm:$0xff] %vm187, %v422
    %563 = vst.msk [vmem:[#allocation10 + $0x8] sm:$0xff] %vm187, %v423
    %564 = vst.msk [vmem:[#allocation11] sm:$0xff] %vm187, %v410
    %565 = vst.msk [vmem:[#allocation11 + $0x8] sm:$0xff] %vm187, %v411
    // Predicated region
    $region58: #{tpu_custom_call.1} parent=1 // pred_check
      _
    $region59: #{tpu_custom_call.1} parent=1 // pred_check_branch
      %567 = sbr.rel (0) target = $region61
    $region60: #{tpu_custom_call.1} parent=1 // pred_region
      _
    $region61: #{tpu_custom_call.1} parent=1 // pred_fallthru
      _
    // Predicated region
    $region62: #{tpu_custom_call.1} parent=1 // pred_check
      _
    $region63: #{tpu_custom_call.1} parent=1 // pred_check_branch
      %569 = sbr.rel (0) target = $region65
    $region64: #{tpu_custom_call.1} parent=1 // pred_region
      %s571 = ssub.s32 256, 256
      %572 = vsyncadd [#allocation4], %s571
      %s573 = sshll.u32 [#allocation10], 4
      %s574 = int_to_ptr.vmem [resolvable:$true] %s573
      %579 = dma.vmem_to_hbm [thread:$0]  %s574, 256, %s11, [#allocation4], 128, 128, 8
    $region65: #{tpu_custom_call.1} parent=1 // pred_fallthru
      _
    // Predicated region
    $region66: #{tpu_custom_call.1} parent=1 // pred_check
      _
    $region67: #{tpu_custom_call.1} parent=1 // pred_check_branch
      %581 = sbr.rel (0) target = $region69
    $region68: #{tpu_custom_call.1} parent=1 // pred_region
      %s583 = ssub.s32 256, 256
      %584 = vsyncadd [#allocation12], %s583
      %s585 = sshll.u32 [#allocation11], 4
      %s586 = int_to_ptr.vmem [resolvable:$true] %s585
      %591 = dma.vmem_to_hbm [thread:$0]  %s586, 256, %s12, [#allocation12], 128, 128, 8
    $region69: #{tpu_custom_call.1} parent=1 // pred_fallthru
      _
    // Predicated region
    $region70: #{tpu_custom_call.1} parent=1 // pred_check
      _
    $region71: #{tpu_custom_call.1} parent=1 // pred_check_branch
      %593 = sbr.rel (0) target = $region73
    $region72: #{tpu_custom_call.1} parent=1 // pred_region
      _
    $region73: #{tpu_custom_call.1} parent=1 // pred_fallthru
      _
    // Predicated region
    $region74: #{tpu_custom_call.1} parent=1 // pred_check
      _
    $region75: #{tpu_custom_call.1} parent=1 // pred_check_branch
      %595 = sbr.rel (0) target = $region77
    $region76: #{tpu_custom_call.1} parent=1 // pred_region
      %596 = dma.done [#allocation4], 256
    $region77: #{tpu_custom_call.1} parent=1 // pred_fallthru
      _
    // Predicated region
    $region78: #{tpu_custom_call.1} parent=1 // pred_check
      _
    $region79: #{tpu_custom_call.1} parent=1 // pred_check_branch
      %598 = sbr.rel (0) target = $region81
    $region80: #{tpu_custom_call.1} parent=1 // pred_region
      %599 = dma.done [#allocation12], 256
    $region81: #{tpu_custom_call.1} parent=1 // pred_fallthru
      _
    %600 = vsyncpa [#allocation3], 1
    %601 = vsyncpa [#allocation6], 1
    %602 = vsyncpa [#allocation9], 1
    %603 = vsyncpa [#allocation4], 1
    %604 = vsyncpa [#allocation12], 1

</llo_original>
